<compile_context>
chip_gen: v7x
topology: tpu7x:2x2x1
jax: 0.10.0
libtpu: 0.0.40
codegen_flags: <defaults>
</compile_context>

<pallas_src>
import functools

import numpy as np
import jax
import jax.numpy as jnp
from jax import lax
from jax.experimental import pallas as pl
from jax.experimental.pallas import tpu as pltpu


def _round_up(v, m):
    return (v + m - 1) // m * m


# ----------------------- lane-roll direction probe ---------------------------
# The packed-gate recurrence rotates gate results between lane groups with
# pltpu.roll.  One of the required shifts is not self-inverse (not lanes/2), so
# we probe the roll direction once on hardware and bake the sign into the
# static shift constants.
_ROLL_SIGN = None


def _roll_sign():
    global _ROLL_SIGN
    if _ROLL_SIGN is None:
        def probe(x_ref, o_ref):
            o_ref[...] = pltpu.roll(x_ref[...], 1, 1)

        x = jnp.tile(jnp.arange(128, dtype=jnp.float32)[None, :], (8, 1))
        y = np.asarray(pl.pallas_call(
            probe, out_shape=jax.ShapeDtypeStruct((8, 128), jnp.float32))(x))
        # np.roll convention: element 0 lands at index 1.
        _ROLL_SIGN = 1 if float(y[0, 1]) == 0.0 else -1
    return _ROLL_SIGN


def _lroll(v, shift, rsign):
    """Rotate lanes of v so element j moves to (j + shift) mod lanes."""
    g = v.shape[-1]
    s = (rsign * shift) % g
    if s == 0:
        return v
    return pltpu.roll(v, s, 1)


# ------------------------- fused GRU + classifier ----------------------------


def _fused_kernel(x_ref, wi_ref, bi_ref, wh_ref, bh_ref,
                  w1_ref, b1_ref, w2_ref, b2_ref, wo_ref, bo_ref,
                  *refs, T, BSH, nh, HW, packed, emit_feat, rsign):
    if emit_feat:
        c_ref, logit_ref, feat_ref = refs[0], refs[1], refs[2]
        gi_scr, hs_scr = refs[3], refs[4]
    else:
        c_ref, logit_ref = refs[0], refs[1]
        feat_ref = None
        gi_scr, hs_scr = refs[2], refs[3]

    f32 = jnp.float32
    cdt = wi_ref.dtype            # matmul-operand dtype (f32 or bf16 weights)
    G = wi_ref.shape[1]           # fused gate width (128 packed / 3*HW else)

    # One-shot input-side projection for every (t, b) row of this batch shard.
    gi_scr[...] = (jnp.dot(x_ref[...].astype(cdt), wi_ref[...],
                           preferred_element_type=f32) + bi_ref[...])

    wh = wh_ref[...]                                    # (HW, G)
    bh_b = jnp.broadcast_to(bh_ref[...], (BSH, G))      # hoisted out of loop

    def step(t, h_prev):
        off = pl.multiple_of(t * BSH, BSH)
        gi = gi_scr[pl.ds(off, BSH), :]                 # (BSH, G)
        gh = jnp.dot(h_prev.astype(cdt), wh,
                     preferred_element_type=f32) + bh_b
        if packed:
            # One 128-lane group: r=[0,nh), z=[nh,2nh), n=[2nh,3nh); the hidden
            # state lives at lanes [0,nh).  Lanes >= nh of h carry bounded junk
            # that never leaks (the corresponding wh/w1 rows are zero), so no
            # lane masks are needed.
            sig = jax.nn.sigmoid(gi + gh)               # r, z valid lanes
            r_at_n = _lroll(sig, 2 * nh, rsign)         # r -> n lanes
            n_full = jnp.tanh(gi + r_at_n * gh)         # n valid lanes
            z_at_h = _lroll(sig, -nh, rsign)            # z -> h lanes
            n_at_h = _lroll(n_full, -2 * nh, rsign)     # n -> h lanes
            h_new = (1.0 - z_at_h) * n_at_h + z_at_h * h_prev
        else:
            # Fallback for 3*nh > 128: per-gate 128-aligned groups (whole-vreg
            # lane slices, padded hidden lanes stay exactly zero).
            r = jax.nn.sigmoid(gi[:, 0:HW] + gh[:, 0:HW])
            z = jax.nn.sigmoid(gi[:, HW:2 * HW] + gh[:, HW:2 * HW])
            n = jnp.tanh(gi[:, 2 * HW:3 * HW] + r * gh[:, 2 * HW:3 * HW])
            h_new = (1.0 - z) * n + z * h_prev
        hs_scr[pl.ds(off, BSH), :] = h_new
        return h_new

    h0 = jnp.zeros((BSH, HW), f32)
    lax.fori_loop(0, T, step, h0, unroll=(True if T <= 16 else 4))

    # --- MLP + linear head + softmax over all T*BSH rows of the shard -------
    hs = hs_scr[...]
    h1 = jnp.maximum(jnp.dot(hs.astype(cdt), w1_ref[...],
                             preferred_element_type=f32) + b1_ref[...], 0.0)
    h2 = jnp.maximum(jnp.dot(h1.astype(cdt), w2_ref[...],
                             preferred_element_type=f32) + b2_ref[...], 0.0)
    logits = jnp.dot(h2.astype(cdt), wo_ref[...],
                     preferred_element_type=f32) + bo_ref[...]

    # Padded action lanes carry a -1e30 bias baked into bo, so their exp()
    # underflows to 0 and no iota/select mask is needed here.
    m = jnp.max(logits, axis=1, keepdims=True)
    e = jnp.exp(logits - m)
    c = e * pl.reciprocal(jnp.sum(e, axis=1, keepdims=True), approx=True)

    c_ref[...] = c
    logit_ref[...] = logits
    if emit_feat:
        feat_ref[...] = h2


@functools.lru_cache(maxsize=None)
def _build_call(T, BSH, nb, nx, G, HW, NH1P, NH2P, NAP, nh, packed,
                emit_feat, rsign):
    TS = T * BSH
    kernel = functools.partial(_fused_kernel, T=T, BSH=BSH, nh=nh, HW=HW,
                               packed=packed, emit_feat=emit_feat, rsign=rsign)

    def wspec(shape):                       # resident weight / bias
        return pl.BlockSpec(shape, lambda i: (0, 0))

    def rowspec(cols):                      # per-batch-shard row slab
        return pl.BlockSpec((TS, cols), lambda i: (i, 0))

    out_shape = [jax.ShapeDtypeStruct((nb * TS, NAP), jnp.float32),   # c
                 jax.ShapeDtypeStruct((nb * TS, NAP), jnp.float32)]   # logits
    out_specs = [rowspec(NAP), rowspec(NAP)]
    if emit_feat:
        out_shape.append(jax.ShapeDtypeStruct((nb * TS, NH2P), jnp.float32))
        out_specs.append(rowspec(NH2P))

    # Rough VMEM budget; only raise the scoped limit when actually needed so
    # the kernel stays safe on v7x's smaller (64 MiB) VMEM.
    # TODO(synk): for very large T additionally tile the input projection /
    # MLP stage over time so gi/hs scratch stops growing linearly with T.
    wbytes = 4 * (nx * G + HW * G + HW * NH1P + NH1P * NH2P + NH2P * NAP
                  + 2 * G + NH1P + NH2P + NAP)
    iobytes = 4 * TS * (nx + 2 * NAP + (NH2P if emit_feat else 0))
    est = 4 * TS * (G + HW) + 2 * (wbytes + iobytes)
    vmem_limit = None if est < 24 * (1 << 20) else int(min(112 * (1 << 20),
                                                           2 * est))

    call = pl.pallas_call(
        kernel,
        out_shape=tuple(out_shape),
        grid_spec=pltpu.PrefetchScalarGridSpec(
            num_scalar_prefetch=0,
            grid=(nb,),                  # batch shards ("parallel" -> both
                                         # TensorCores on v7x)
            in_specs=[
                rowspec(nx),                               # x rows (shard)
                wspec((nx, G)), wspec((1, G)),             # fused W_i, b_i
                wspec((HW, G)), wspec((1, G)),             # fused W_h, b_h
                wspec((HW, NH1P)), wspec((1, NH1P)),       # MLP layer 1
                wspec((NH1P, NH2P)), wspec((1, NH2P)),     # MLP layer 2
                wspec((NH2P, NAP)), wspec((1, NAP)),       # output head
            ],
            out_specs=out_specs,
            scratch_shapes=[pltpu.VMEM((TS, G), jnp.float32),    # gi
                            pltpu.VMEM((TS, HW), jnp.float32)],  # all hidden
        ),
        compiler_params=pltpu.CompilerParams(
            dimension_semantics=("parallel",),
            vmem_limit_bytes=vmem_limit),
    )
    return jax.jit(call)


# ------------------------- parameter preparation -----------------------------


def prepare_params(p, nx, nh, nh_mlp, n_action, matmul_dtype=jnp.float32):
    """Fuse/pack the GRU gate weights and zero-pad everything lane-dense.

    matmul_dtype: storage dtype for matmul weights (biases stay f32).
    jnp.bfloat16 halves the weight DMA and uses the native MXU rate on
    v6e/v7x; keep f32 on v5e or when exact f32 matmul numerics are required.
    """
    packed = 3 * nh <= 128
    HW = 128 if packed else _round_up(nh, 128)   # hidden lane width
    goff = nh if packed else HW                  # gate column stride
    G = 128 if packed else 3 * HW                # fused gate width
    NH1P = _round_up(nh_mlp[0], 128)
    NH2P = _round_up(nh_mlp[1], 128)
    NAP = _round_up(n_action, 128)

    def padw(a, rows, cols):
        o = np.zeros((rows, cols), np.float32)
        a = np.asarray(a, np.float32)
        o[:a.shape[0], :a.shape[1]] = a
        return o

    wi = np.zeros((nx, G), np.float32)
    wh = np.zeros((HW, G), np.float32)
    bi = np.zeros((1, G), np.float32)
    bh = np.zeros((1, G), np.float32)
    for g, (wig, whg) in enumerate((("wir", "whr"), ("wiz", "whz"),
                                    ("win", "whn"))):
        wi[:, g * goff:g * goff + nh] = np.asarray(p[wig], np.float32)
        wh[:nh, g * goff:g * goff + nh] = np.asarray(p[whg], np.float32)
    # Combined r/z biases ride on the input side; only the n gate keeps a
    # hidden-side bias (it sits inside the r * (.) term).
    bi[0, 0 * goff:0 * goff + nh] = np.asarray(p["br"], np.float32)[0]
    bi[0, 1 * goff:1 * goff + nh] = np.asarray(p["bz"], np.float32)[0]
    bi[0, 2 * goff:2 * goff + nh] = np.asarray(p["bin"], np.float32)[0]
    bh[0, 2 * goff:2 * goff + nh] = np.asarray(p["bhn"], np.float32)[0]

    # Head bias: padded action lanes get -1e30 so the in-kernel softmax needs
    # no explicit mask (requires n_action >= 1).
    assert n_action >= 1
    bo = np.full((1, NAP), -1e30, np.float32)
    bo[0, :n_action] = np.asarray(p["bo"], np.float32)[0]

    wdt = matmul_dtype
    return dict(
        wi=jnp.asarray(wi, wdt), bi=jnp.asarray(bi),
        wh=jnp.asarray(wh, wdt), bh=jnp.asarray(bh),
        w1=jnp.asarray(padw(p["w1"], HW, NH1P), wdt),
        b1=jnp.asarray(padw(p["b1"], 1, NH1P)),
        w2=jnp.asarray(padw(p["w2"], NH1P, NH2P), wdt),
        b2=jnp.asarray(padw(p["b2"], 1, NH2P)),
        wo=jnp.asarray(padw(p["wo"], NH2P, NAP), wdt),
        bo=jnp.asarray(bo),
        dims=dict(G=G, HW=HW, NH1P=NH1P, NH2P=NH2P, NAP=NAP,
                  nh=nh, nh2=nh_mlp[1], na=n_action, packed=packed),
    )


# ----------------------------- full forward ----------------------------------


def act_classifier_forward(x, fn, prep, is_feat=False):
    """x: (T, B, nx) time-major input, fn: (B, T) 0/1 frame mask (concrete)."""
    T, B, nx = x.shape
    d = prep["dims"]
    # Batch is sharded into sublane-aligned blocks; each shard is one grid
    # step, so per-step VMEM is bounded independently of total batch.
    BSH = min(_round_up(B, 8), 64)
    BP = _round_up(B, BSH)
    nb = BP // BSH
    TS = T * BSH

    x_p = jnp.zeros((T, BP, nx), jnp.float32).at[:, :B, :].set(
        x.astype(jnp.float32))
    # row layout: ((shard * T + t) * BSH + b_local)
    x2d = x_p.reshape(T, nb, BSH, nx).transpose(1, 0, 2, 3).reshape(
        nb * TS, nx)

    rsign = _roll_sign() if d["packed"] else 1
    call = _build_call(T, BSH, nb, nx, d["G"], d["HW"], d["NH1P"], d["NH2P"],
                       d["NAP"], d["nh"], d["packed"], bool(is_feat), rsign)
    # TODO(synk): if this classifier is invoked once per rollout step, keep the
    # packed weights resident across calls (cross-call VMEM/semaphore-output
    # prefetch) instead of re-DMAing ~the whole weight set every launch.
    outs = call(x2d, prep["wi"], prep["bi"], prep["wh"], prep["bh"],
                prep["w1"], prep["b1"], prep["w2"], prep["b2"],
                prep["wo"], prep["bo"])
    c_p, logit_p = outs[0], outs[1]

    # TODO(synk): the `fn == 1` boolean selection has a data-dependent output
    # shape, so it stays as concrete host-side glue on the tiny per-frame
    # results (matches the PyTorch module's boolean indexing order).
    mask = np.asarray(fn) == 1
    bsel, tsel = np.nonzero(mask)
    rows = ((bsel // BSH) * T + tsel) * BSH + (bsel % BSH)
    c = c_p[rows, :d["na"]]
    h = logit_p[rows, :d["na"]]
    if is_feat:
        return c, h, outs[2][rows, :d["nh2"]]
    return c, h


# ------------------------------ reference ------------------------------------


def ref_forward(x, fn, p):
    """Pure-JAX reference with the same math as the PyTorch module."""
    T, B, _ = x.shape
    nh = p["whr"].shape[0]
    h = jnp.zeros((B, nh), jnp.float32)
    hs = []
    for t in range(T):
        xt = x[t]
        r = jax.nn.sigmoid(xt @ p["wir"] + h @ p["whr"] + p["br"])
        z = jax.nn.sigmoid(xt @ p["wiz"] + h @ p["whz"] + p["bz"])
        n = jnp.tanh(xt @ p["win"] + p["bin"] + r * (h @ p["whn"] + p["bhn"]))
        h = (1.0 - z) * n + z * h
        hs.append(h)
    h_bt = jnp.stack(hs, 0).transpose(1, 0, 2)        # (B, T, nh)
    mask = np.asarray(fn) == 1
    bi, ti = np.nonzero(mask)
    hx = h_bt[bi, ti]
    h1 = jnp.maximum(hx @ p["w1"] + p["b1"], 0.0)
    h2 = jnp.maximum(h1 @ p["w2"] + p["b2"], 0.0)
    logits = h2 @ p["wo"] + p["bo"]
    c = jax.nn.softmax(logits, axis=1)
    return c, logits


def _make_params(key, nx, nh, nh_mlp, n_action, s=0.1):
    ks = jax.random.split(key, 16)
    nrm = lambda k, shp: s * jax.random.normal(k, shp, jnp.float32)
    return {
        # GRU weights, stored transposed as (in, out)
        "wir": nrm(ks[0], (nx, nh)), "wiz": nrm(ks[1], (nx, nh)),
        "win": nrm(ks[2], (nx, nh)),
        "whr": nrm(ks[3], (nh, nh)), "whz": nrm(ks[4], (nh, nh)),
        "whn": nrm(ks[5], (nh, nh)),
        # combined r/z biases (b_ir + b_hr etc.); n-gate biases kept separate
        "br": nrm(ks[6], (1, nh)), "bz": nrm(ks[7], (1, nh)),
        "bin": nrm(ks[8], (1, nh)), "bhn": nrm(ks[9], (1, nh)),
        # MLP + output head
        "w1": nrm(ks[10], (nh, nh_mlp[0])), "b1": nrm(ks[11], (1, nh_mlp[0])),
        "w2": nrm(ks[12], (nh_mlp[0], nh_mlp[1])),
        "b2": nrm(ks[13], (1, nh_mlp[1])),
        "wo": nrm(ks[14], (nh_mlp[1], n_action)),
        "bo": nrm(ks[15], (1, n_action)),
    }


# --------------------------------- main ---------------------------------------


if __name__ == "__main__":
    T, B = 8, 2           # horizon / batch
    nx = 16               # input feature dim
    nh_rnn = 32           # GRU hidden (3*32 <= 128 -> packed recurrence)
    nh_mlp = [48, 32]     # MLP hidden sizes (c_mlp.out_dim = 32)
    n_action = 8

    kp, kx, kp2 = jax.random.split(jax.random.PRNGKey(0), 3)
    params = _make_params(kp, nx, nh_rnn, nh_mlp, n_action)
    x = jax.random.normal(kx, (T, B, nx), jnp.float32)
    # fn: (B, T) frame-selection mask of 0/1 (concrete)
    fn = np.zeros((B, T), dtype=np.int32)
    fn[0, [1, 3, 7]] = 1
    fn[1, [0, 5]] = 1

    c_ref, h_ref = ref_forward(x, fn, params)

    # --- main path: packed gates, f32 matmul operands -----------------------
    prep = prepare_params(params, nx, nh_rnn, nh_mlp, n_action)
    c, h = act_classifier_forward(x, fn, prep)
    jax.block_until_ready((c, h))
    np.testing.assert_allclose(np.asarray(h), np.asarray(h_ref),
                               atol=1e-4, rtol=1e-4)
    # c uses the EUP approximate reciprocal -> slightly looser tolerance
    np.testing.assert_allclose(np.asarray(c), np.asarray(c_ref),
                               atol=1e-3, rtol=1e-3)
    assert c.shape == (int(fn.sum()), n_action) and h.shape == c.shape

    # is_feat path: feature output is only materialized when requested
    c2, h2, feat = act_classifier_forward(x, fn, prep, is_feat=True)
    jax.block_until_ready((c2, h2, feat))
    assert feat.shape == (int(fn.sum()), nh_mlp[-1])
    np.testing.assert_allclose(np.asarray(h2), np.asarray(h_ref),
                               atol=1e-4, rtol=1e-4)

    # --- bf16 matmul operands (v6e/v7x fast path), looser tolerance ----------
    prep_bf16 = prepare_params(params, nx, nh_rnn, nh_mlp, n_action,
                               matmul_dtype=jnp.bfloat16)
    cb, hb = act_classifier_forward(x, fn, prep_bf16)
    jax.block_until_ready((cb, hb))
    np.testing.assert_allclose(np.asarray(hb), np.asarray(h_ref),
                               atol=5e-2, rtol=5e-2)
    np.testing.assert_allclose(np.asarray(cb), np.asarray(c_ref),
                               atol=5e-2, rtol=5e-2)

    # --- general fallback path (3*nh > 128): per-gate 128-aligned groups -----
    nh_big = 48
    params_big = _make_params(kp2, nx, nh_big, nh_mlp, n_action)
    prep_big = prepare_params(params_big, nx, nh_big, nh_mlp, n_action)
    cg, hg = act_classifier_forward(x, fn, prep_big)
    jax.block_until_ready((cg, hg))
    cg_ref, hg_ref = ref_forward(x, fn, params_big)
    np.testing.assert_allclose(np.asarray(hg), np.asarray(hg_ref),
                               atol=1e-4, rtol=1e-4)
    np.testing.assert_allclose(np.asarray(cg), np.asarray(cg_ref),
                               atol=1e-3, rtol=1e-3)

    print("KERNEL_OK")
</pallas_src>

<mosaic_0001>
module attributes {stable_mosaic.version = 11 : i64} {
  func.func @probe(%arg0: memref<8x128xf32, #tpu.memory_space<vmem>>, %arg1: memref<8x128xf32, #tpu.memory_space<vmem>>) attributes {dimension_semantics = [], scalar_prefetch = 0 : i64, scratch_operands = 0 : i64, tpu.core_type = #tpu.core_type<tc>} {
    %c0 = arith.constant 0 : index
    %c0_0 = arith.constant 0 : index
    %0 = vector.load %arg0[%c0, %c0_0] : memref<8x128xf32, #tpu.memory_space<vmem>>, vector<8x128xf32>
    %c1_i32 = arith.constant 1 : i32
    %1 = tpu.dynamic_rotate %0 by %c1_i32 dim 1 : vector<8x128xf32>, i32 -> vector<8x128xf32>
    %c0_1 = arith.constant 0 : index
    %c0_2 = arith.constant 0 : index
    %2 = vector.load %arg1[%c0_1, %c0_2] : memref<8x128xf32, #tpu.memory_space<vmem>>, vector<8x128xf32>
    tpu.vector_store %arg1[%c0_1, %c0_2], %1 {strides = array<i32>} : memref<8x128xf32, #tpu.memory_space<vmem>>, vector<8x128xf32>,
    return
  }
}

</mosaic_0001>

<llo_original>
// kernel: tpu_custom_call.1
$region0: #{tpu_custom_call.1}
  #allocation0 [shape = 'u32[]', space=smem, size = 0x4, offset = 0x4, fixed_abs, tag = 'smem constant byte address 0x4 - core index']
  #allocation1 [shape = 'u32[144,128]{1,0:T(1,128)}', space=vmem, size = 0x12000, scoped, tag = 'internal scratch']
  %s0 = inlined_call_operand.hbm [shape: f32[8,128], index: 0, kind: input, shape index: {}]
  %s1 = inlined_call_operand.hbm [shape: f32[8,128], index: 1, kind: output, shape index: {}]
  %s2 = sld [smem:[#allocation0]]
  $region18: #{tpu_custom_call.1} parent=0
    _
  %s4 = ssub.s32 1, %s2
  %s5 = scalar_select 0, %s4, %s2
  $region1: #{tpu_custom_call.1} parent=0
    #allocation2 [shape = 'u8[4096]{0}', space=vmem, size = 0x1000, scoped, tag = 'input window, operand 0, single buffered']
    #allocation3 [shape = 's32[1]{0}', space=sflag, size = 0x4, scoped, tag = 'scoped memory for tpu_custom_call.1']
    #allocation4 [shape = 's32[1]{0}', space=sflag, size = 0x4, scoped, tag = 'scoped memory for tpu_custom_call.1']
    #allocation5 [shape = 'u8[4096]{0}', space=vmem, size = 0x1000, scoped, tag = 'output window, operand 0, single buffered']
    %6 = vsyncpa [#allocation3], 0
    %7 = vsyncpa [#allocation4], 0
    // Predicated region
    $region2: #{tpu_custom_call.1} parent=1 // pred_check
      _
    $region3: #{tpu_custom_call.1} parent=1 // pred_check_branch
      %9 = sbr.rel (0) target = $region5
    $region4: #{tpu_custom_call.1} parent=1 // pred_region
      %s11 = ssub.s32 128, 128
      %12 = vsyncadd [#allocation3], %s11
      %s14 = sshll.u32 [#allocation2], 4
      %s15 = int_to_ptr.vmem [resolvable:$true] %s14
      %17 = dma.hbm_to_vmem [thread:$0]  %s0, 128, %s15, [#allocation3]
    $region5: #{tpu_custom_call.1} parent=1 // pred_fallthru
      _
    // Predicated region
    $region6: #{tpu_custom_call.1} parent=1 // pred_check
      _
    $region7: #{tpu_custom_call.1} parent=1 // pred_check_branch
      %19 = sbr.rel (0) target = $region9
    $region8: #{tpu_custom_call.1} parent=1 // pred_region
      %20 = dma.done [#allocation3], 128
    $region9: #{tpu_custom_call.1} parent=1 // pred_fallthru
      _
    %v21 = vld [vmem:[#allocation2] sm:$0xff]
    %22 = vrot.lane.b32.xlu0 %v21, 1
    %v23 = vpop.permute.xlu0 %22
    %24 = vst [vmem:[#allocation5] sm:$0xff] %v23
    // Predicated region
    $region10: #{tpu_custom_call.1} parent=1 // pred_check
      _
    $region11: #{tpu_custom_call.1} parent=1 // pred_check_branch
      %26 = sbr.rel (0) target = $region13
    $region12: #{tpu_custom_call.1} parent=1 // pred_region
      %s28 = ssub.s32 128, 128
      %29 = vsyncadd [#allocation4], %s28
      %s31 = sshll.u32 [#allocation5], 4
      %s32 = int_to_ptr.vmem [resolvable:$true] %s31
      %34 = dma.vmem_to_hbm [thread:$0]  %s32, 128, %s1, [#allocation4]
    $region13: #{tpu_custom_call.1} parent=1 // pred_fallthru
      _
    // Predicated region
    $region14: #{tpu_custom_call.1} parent=1 // pred_check
      _
    $region15: #{tpu_custom_call.1} parent=1 // pred_check_branch
      %36 = sbr.rel (0) target = $region17
    $region16: #{tpu_custom_call.1} parent=1 // pred_region
      %37 = dma.done [#allocation4], 128
    $region17: #{tpu_custom_call.1} parent=1 // pred_fallthru
      _
    %38 = vsyncpa [#allocation3], 1
    %39 = vsyncpa [#allocation4], 1

</llo_original>
